<compile_context>
chip_gen: v5e
topology: v5e:2x2
jax: 0.10.0
libtpu: 0.0.40
codegen_flags: <defaults>
</compile_context>

<pallas_src>
import jax
import jax.numpy as jnp
from jax.experimental import pallas as pl
from jax.experimental.pallas import tpu as pltpu


def _make_loss_kernel(hw: int, t_hw: int, need_mask: bool):
    def loss_kernel(x_ref, o_ref, acc_ref):
        s = pl.program_id(1)

        @pl.when(s == 0)
        def _():
            acc_ref[...] = jnp.zeros_like(acc_ref)

        x = x_ref[...].astype(jnp.float32)          # (1, C, t_hw)
        diff = 1.0 - x
        sq_sum = jnp.sum(diff * diff, axis=1)       # (1, t_hw): sublane reduce over C
        norms = jnp.sqrt(sq_sum)                    # (1, t_hw): per-position L2 norm

        if need_mask:
            # last spatial tile is clipped: zero out out-of-range lanes
            col = jax.lax.broadcasted_iota(jnp.int32, (1, t_hw), 1)
            pos = s * t_hw + col
            norms = jnp.where(pos < hw, norms, 0.0)

        # lane-wide accumulation: no cross-lane reduce, no scalar RMW per step
        acc_ref[...] = acc_ref[...] + norms

        @pl.when(s == pl.num_programs(1) - 1)
        def _():
            total = jnp.sum(acc_ref[...])           # one cross-lane reduce per batch
            o_ref[...] = jnp.full(o_ref.shape, total, jnp.float32)

    return loss_kernel


def lenc_loss(d_fake_img, tile_hw=None):
    """d_fake_img: (B, C, H, W) float array (f32 or bf16). Returns scalar f32 loss."""
    B, C, H, W = d_fake_img.shape
    HW = H * W
    x = d_fake_img.reshape(B, C, HW)    # keep input dtype (no up-cast in the wrapper)

    itemsize = jnp.dtype(d_fake_img.dtype).itemsize
    if tile_hw is None:
        # ~2 MiB input block -> ~4 MiB double-buffered; comfortably inside the
        # default scoped-VMEM limit on v5e/v6e/v7x and big enough to hide the
        # per-step pipeline overhead (~0.35 us).
        target_bytes = 2 << 20
        t_hw = max(128, (target_bytes // (C * itemsize)) // 128 * 128)
    else:
        t_hw = max(128, (tile_hw // 128) * 128)
    if HW <= t_hw:
        t_hw = HW                        # full spatial extent: no tiling / masking
    n_s = pl.cdiv(HW, t_hw)
    need_mask = (HW % t_hw) != 0

    partial = pl.pallas_call(
        _make_loss_kernel(HW, t_hw, need_mask),
        out_shape=jax.ShapeDtypeStruct((B, 1, 128), jnp.float32),
        grid_spec=pltpu.PrefetchScalarGridSpec(
            num_scalar_prefetch=0,
            grid=(B, n_s),
            in_specs=[pl.BlockSpec((1, C, t_hw), lambda b, s: (b, 0, s))],
            out_specs=pl.BlockSpec((1, 1, 128), lambda b, s: (b, 0, 0)),
            scratch_shapes=[pltpu.VMEM((1, t_hw), jnp.float32)],
        ),
        compiler_params=pltpu.CompilerParams(
            # batch axis is independent -> parallel (megacore shard on v7x);
            # spatial-tile axis is the per-batch reduction -> arbitrary (last)
            dimension_semantics=("parallel", "arbitrary"),
        ),
    )(x)

    # every lane of a row carries the same per-batch partial sum
    return jnp.sum(partial[:, 0, 0]) / jnp.float32(B * HW)


def _ref_loss(d_fake_img):
    x = d_fake_img.astype(jnp.float32)
    return jnp.mean(jnp.sqrt(jnp.sum((1.0 - x) ** 2, axis=1)))


if __name__ == "__main__":
    key = jax.random.PRNGKey(0)

    # primary small test matching the module's NCHW input
    B, C, H, W = 2, 4, 16, 16
    d_fake_img = jax.random.normal(key, (B, C, H, W), dtype=jnp.float32)
    loss = jax.block_until_ready(lenc_loss(d_fake_img))
    ref = _ref_loss(d_fake_img)
    assert jnp.allclose(loss, ref, rtol=1e-5, atol=1e-5), (loss, ref)

    # exercise the tiled spatial path (grid=(B, 2), no remainder)
    loss_t = jax.block_until_ready(lenc_loss(d_fake_img, tile_hw=128))
    assert jnp.allclose(loss_t, ref, rtol=1e-5, atol=1e-5), (loss_t, ref)

    # exercise the clipped-last-tile masking path (HW=144, tile=128)
    x2 = jax.random.normal(jax.random.PRNGKey(1), (2, 4, 12, 12), dtype=jnp.float32)
    loss_m = jax.block_until_ready(lenc_loss(x2, tile_hw=128))
    ref2 = _ref_loss(x2)
    assert jnp.allclose(loss_m, ref2, rtol=1e-5, atol=1e-5), (loss_m, ref2)

    # bf16 input path (input stays bf16 in HBM, f32 accumulation in-kernel)
    x3 = jax.random.normal(jax.random.PRNGKey(2), (2, 4, 16, 16), dtype=jnp.bfloat16)
    loss_b = jax.block_until_ready(lenc_loss(x3))
    ref3 = _ref_loss(x3)
    assert jnp.allclose(loss_b, ref3, rtol=2e-2, atol=2e-2), (loss_b, ref3)

    print("KERNEL_OK")
</pallas_src>

<mosaic_0001>
module attributes {stable_mosaic.version = 11 : i64} {
  func.func @loss_kernel(%arg0: i32, %arg1: i32, %arg2: memref<1x4x256xf32, #tpu.memory_space<vmem>>, %arg3: memref<1x1x128xf32, #tpu.memory_space<vmem>>, %arg4: memref<1x256xf32, #tpu.memory_space<vmem>>) attributes {dimension_semantics = [#tpu.dimension_semantics<parallel>, #tpu.dimension_semantics<arbitrary>], iteration_bounds = array<i64: 2, 1>, scalar_prefetch = 0 : i64, scratch_operands = 1 : i64, tpu.core_type = #tpu.core_type<tc>, window_params = [{transform_indices = @transform_0, window_bounds = array<i64: 1, 4, 256>}, {transform_indices = @transform_1, window_bounds = array<i64: 1, 1, 128>}]} {
    %c0_i32 = arith.constant 0 : i32
    %0 = arith.cmpi eq, %arg1, %c0_i32 : i32
    %1 = arith.extui %0 : i1 to i32
    %c0_i32_0 = arith.constant 0 : i32
    %2 = arith.cmpi ne, %1, %c0_i32_0 : i32
    scf.if %2 {
      %cst_10 = arith.constant 0.000000e+00 : f32
      %15 = vector.broadcast %cst_10 : f32 to vector<1x256xf32>
      %c0_11 = arith.constant 0 : index
      %c0_12 = arith.constant 0 : index
      %16 = vector.load %arg4[%c0_11, %c0_12] : memref<1x256xf32, #tpu.memory_space<vmem>>, vector<1x256xf32>
      tpu.vector_store %arg4[%c0_11, %c0_12], %15 {strides = array<i32>} : memref<1x256xf32, #tpu.memory_space<vmem>>, vector<1x256xf32>,
    } else {
    }
    %c0 = arith.constant 0 : index
    %c0_1 = arith.constant 0 : index
    %c0_2 = arith.constant 0 : index
    %3 = vector.load %arg2[%c0, %c0_1, %c0_2] : memref<1x4x256xf32, #tpu.memory_space<vmem>>, vector<1x4x256xf32>
    %cst = arith.constant 1.000000e+00 : f32
    %4 = vector.broadcast %cst : f32 to vector<1x4x256xf32>
    %5 = arith.subf %4, %3 : vector<1x4x256xf32>
    %6 = arith.mulf %5, %5 : vector<1x4x256xf32>
    %cst_3 = arith.constant dense<0.000000e+00> : vector<1x256xf32>
    %7 = vector.multi_reduction <add>, %6, %cst_3 [1] : vector<1x4x256xf32> to vector<1x256xf32>
    %8 = math.sqrt %7 : vector<1x256xf32>
    %c0_4 = arith.constant 0 : index
    %c0_5 = arith.constant 0 : index
    %9 = vector.load %arg4[%c0_4, %c0_5] : memref<1x256xf32, #tpu.memory_space<vmem>>, vector<1x256xf32>
    %10 = arith.addf %9, %8 : vector<1x256xf32>
    %c0_6 = arith.constant 0 : index
    %c0_7 = arith.constant 0 : index
    %11 = vector.load %arg4[%c0_6, %c0_7] : memref<1x256xf32, #tpu.memory_space<vmem>>, vector<1x256xf32>
    tpu.vector_store %arg4[%c0_6, %c0_7], %10 {strides = array<i32>} : memref<1x256xf32, #tpu.memory_space<vmem>>, vector<1x256xf32>,
    %c0_i32_8 = arith.constant 0 : i32
    %12 = arith.cmpi eq, %arg1, %c0_i32_8 : i32
    %13 = arith.extui %12 : i1 to i32
    %c0_i32_9 = arith.constant 0 : i32
    %14 = arith.cmpi ne, %13, %c0_i32_9 : i32
    scf.if %14 {
      %c0_10 = arith.constant 0 : index
      %c0_11 = arith.constant 0 : index
      %15 = vector.load %arg4[%c0_10, %c0_11] : memref<1x256xf32, #tpu.memory_space<vmem>>, vector<1x256xf32>
      %16 = vector.shape_cast %15 : vector<1x256xf32> to vector<1x1x256xf32>
      %cst_12 = arith.constant dense<0.000000e+00> : vector<1xf32>
      %17 = vector.multi_reduction <add>, %16, %cst_12 [1, 2] : vector<1x1x256xf32> to vector<1xf32>
      %18 = vector.shape_cast %17 : vector<1xf32> to vector<1x1x1xf32>
      %19 = vector.extract %18[0, 0, 0] : f32 from vector<1x1x1xf32>
      %20 = vector.broadcast %19 : f32 to vector<1x1x128xf32>
      %c0_13 = arith.constant 0 : index
      %c0_14 = arith.constant 0 : index
      %c0_15 = arith.constant 0 : index
      %21 = vector.load %arg3[%c0_13, %c0_14, %c0_15] : memref<1x1x128xf32, #tpu.memory_space<vmem>>, vector<1x1x128xf32>
      tpu.vector_store %arg3[%c0_13, %c0_14, %c0_15], %20 {strides = array<i32>} : memref<1x1x128xf32, #tpu.memory_space<vmem>>, vector<1x1x128xf32>,
    } else {
    }
    return
  }
  func.func @transform_0(%arg0: i32, %arg1: i32) -> (i32, i32, i32) {
    %c0_i32 = arith.constant 0 : i32
    %c0_i32_0 = arith.constant 0 : i32
    return %arg0, %c0_i32, %arg1 : i32, i32, i32
  }
  func.func @transform_1(%arg0: i32, %arg1: i32) -> (i32, i32, i32) {
    %c0_i32 = arith.constant 0 : i32
    %c0_i32_0 = arith.constant 0 : i32
    %c0_i32_1 = arith.constant 0 : i32
    return %arg0, %c0_i32, %c0_i32_0 : i32, i32, i32
  }
}

</mosaic_0001>

<llo_original>
// kernel: tpu_custom_call.1
$region0: #{tpu_custom_call.1}
  #allocation0 [shape = 'u32[]', space=smem, size = 0x4, offset = 0x4, fixed_abs, tag = 'smem constant byte address 0x4 - core index']
  #allocation1 [shape = 'u32[72,128]{1,0:T(1,128)}', space=vmem, size = 0x9000, scoped, tag = 'internal scratch']
  #allocation2 [shape = 'f32[1,256]{1,0:T(1,128)}', space=vmem, size = 0x400, scoped, tag = 'scratch operand']
  %s0 = inlined_call_operand.hbm [shape: f32[2,4,256], index: 0, kind: input, shape index: {}]
  %s1 = inlined_call_operand.hbm [shape: f32[2,1,128], index: 1, kind: output, shape index: {}]
  %s2 = sld [smem:[#allocation0]]
  $region49: #{tpu_custom_call.1} parent=0
    _
  %s4 = ssub.s32 1, %s2
  %s5 = scalar_select 0, %s4, %s2
  $region1: #{tpu_custom_call.1} parent=0
    #allocation3 [shape = 'u8[8192]{0}', space=vmem, size = 0x2000, scoped, tag = 'input window, operand 0']
    #allocation4 [shape = 's32[2]{0}', space=sflag, size = 0x8, scoped, tag = 'scoped memory for tpu_custom_call.1']
    #allocation5 [shape = 's32[2]{0}', space=sflag, size = 0x8, scoped, tag = 'scoped memory for tpu_custom_call.1']
    #allocation6 [shape = 'u8[1024]{0}', space=vmem, size = 0x400, scoped, tag = 'output window, operand 0']
    %6 = vsyncpa [#allocation4], 0
    %s7 = scalar_lea.sflag [#allocation4], 1
    %8 = vsyncpa %s7, 0
    %9 = vsyncpa [#allocation5], 0
    %s10 = scalar_lea.sflag [#allocation5], 1
    %11 = vsyncpa %s10, 0
    loop: start=0, step=1, limit=4
    $region2: #{tpu_custom_call.1} parent=1 // loop_pre_header
      _
    $region3: #{tpu_custom_call.1} parent=1 // loop_header
      %s13 = sphi 0, %s17
      %p14 = scmp.ge.s32.totalorder %s13, 4
      %s20 = sphi 0, %s32
      %s21 = sphi 0, %s28
      %s22 = sphi 0, %s20
      %s23 = sphi 0, %s21
      %s24 = sphi 0, %s22
      %s25 = sphi 0, %s23
      %s37 = sphi 0, %s39
      %s40 = sphi 0, %s37
      %s41 = sphi 0, %s40
      %s57 = sphi 0, %s41
      %s63 = sphi 0, %s65
      %s66 = sphi 0, %s63
      %s67 = sphi 0, %s66
      %s83 = sphi 0, %s67
    $region4: #{tpu_custom_call.1} parent=1 // loop_header_branch
      %16 = sbr.rel (%p14) target = $region8
    $region5: #{tpu_custom_call.1} parent=1 // loop_body
      %s18 = ssub.s32 %s13, 1
      %s19 = ssub.s32 %s13, 2
      %s26 = sadd.s32 1, %s21
      %p27 = scmp.ge.s32.totalorder %s26, 1
      %s28 = scalar_select %p27, 0, %s26
      %s29 = sadd.s32 1, %s20
      %s30 = scalar_select %p27, %s29, %s20
      %p31 = scmp.ge.s32.totalorder %s30, 2
      %s32 = scalar_select %p31, 0, %s30
      %s33 = ssub.s32 %s20, %s32
      %s34 = ssub.s32 %s21, %s28
      %s35 = sor.u32 %s33, %s34
      %p36 = scmp.eq.s32.totalorder %s35, 0
      %s38 = sadd.s32 %s37, 1
      %s39 = scalar_select %p36, %s37, %s38
      %p42 = pneg %p36
      %p43 = scmp.eq.s32.totalorder %s13, 1
      %p44 = por %p42, %p43
      %p45 = scmp.ne.s32.totalorder %s37, %s40
      %p46 = scmp.eq.s32.totalorder %s13, 0
      %p47 = por %p45, %p46
      %p48 = scmp.ne.s32.totalorder %s37, %s40
      %p49 = scmp.eq.s32.totalorder %s18, 1
      %p50 = por %p48, %p49
      %p51 = scmp.ne.s32.totalorder %s40, %s41
      %p52 = scmp.eq.s32.totalorder %s18, 0
      %p53 = por %p51, %p52
      %p54 = scmp.ne.s32.totalorder %s40, %s41
      %p55 = scmp.eq.s32.totalorder %s19, 1
      %p56 = por %p54, %p55
      %p58 = scmp.ne.s32.totalorder %s41, %s57
      %p59 = scmp.eq.s32.totalorder %s19, 0
      %p60 = por %p58, %p59
      %s61 = ssub.s32 %s20, %s32
      %p62 = scmp.eq.s32.totalorder %s61, 0
      %s64 = sadd.s32 %s63, 1
      %s65 = scalar_select %p62, %s63, %s64
      %p68 = pneg %p62
      %p69 = scmp.eq.s32.totalorder %s13, 1
      %p70 = por %p68, %p69
      %p71 = scmp.ne.s32.totalorder %s63, %s66
      %p72 = scmp.eq.s32.totalorder %s13, 0
      %p73 = por %p71, %p72
      %p74 = scmp.ne.s32.totalorder %s63, %s66
      %p75 = scmp.eq.s32.totalorder %s18, 1
      %p76 = por %p74, %p75
      %p77 = scmp.ne.s32.totalorder %s66, %s67
      %p78 = scmp.eq.s32.totalorder %s18, 0
      %p79 = por %p77, %p78
      %p80 = scmp.ne.s32.totalorder %s66, %s67
      %p81 = scmp.eq.s32.totalorder %s19, 1
      %p82 = por %p80, %p81
      %p84 = scmp.ne.s32.totalorder %s67, %s83
      %p85 = scmp.eq.s32.totalorder %s19, 0
      %p86 = por %p84, %p85
      %p87 = scmp.le.s32.totalorder 1, %s13
      %p88 = scmp.lt.s32.totalorder %s13, 3
      %p89 = pnand %p87, %p88
      %p90 = pneg %p89
      // Predicated region
      $region9: #{tpu_custom_call.1} parent=5 // pred_check
        _
      $region10: #{tpu_custom_call.1} parent=5 // pred_check_branch
        %92 = sbr.rel (%p89) target = $region12
      $region11: #{tpu_custom_call.1} parent=5 // pred_region
        %s93 = ssub.s32 %s13, 1
      $region12: #{tpu_custom_call.1} parent=5 // pred_fallthru
        _
      %p94 = scmp.lt.s32.totalorder %s13, 2
      // Predicated region
      $region13: #{tpu_custom_call.1} parent=5 // pred_check
        %p95 = pneg %p94
      $region14: #{tpu_custom_call.1} parent=5 // pred_check_branch
        %97 = sbr.rel (%p95) target = $region16
      $region15: #{tpu_custom_call.1} parent=5 // pred_region
        // Predicated region
        $region17: #{tpu_custom_call.1} parent=15 // pred_check
          %p98 = pneg %p47
        $region18: #{tpu_custom_call.1} parent=15 // pred_check_branch
          %100 = sbr.rel (%p98) target = $region20
        $region19: #{tpu_custom_call.1} parent=15 // pred_region
          %s101 = sand.u32 %s37, 1
          %s102 = scalar_lea.sflag [#allocation4], %s101
          %s103 = sand.u32 %s37, 1
          %s104 = smul.addr %s103, 8
          %s105 = scalar_lea.vmem [#allocation3], %s104
          %s106 = smul.u32 2, %s21
          %108 = vsyncadd %s102, 0
          %s109 = smul.addr %s20, 2
          %s110 = sadd.s32 %s106, %s109
          %s111 = smul.addr %s110, 4
          %s112 = scalar_lea.hbm %s0, %s111
          %s114 = sshll.u32 %s112, 4
          %s115 = int_to_ptr.hbm [resolvable:$true] %s114
          %s116 = sshll.u32 %s105, 4
          %s117 = int_to_ptr.vmem [resolvable:$true] %s116
          %119 = dma.hbm_to_vmem [thread:$0]  %s115, 128, %s117, %s102
        $region20: #{tpu_custom_call.1} parent=15 // pred_fallthru
          _
      $region16: #{tpu_custom_call.1} parent=5 // pred_fallthru
        _
      %p120 = scmp.le.s32.totalorder 1, %s13
      %p121 = scmp.lt.s32.totalorder %s13, 3
      %p122 = pnand %p120, %p121
      %p123 = pneg %p122
      // Predicated region
      $region21: #{tpu_custom_call.1} parent=5 // pred_check
        _
      $region22: #{tpu_custom_call.1} parent=5 // pred_check_branch
        %125 = sbr.rel (%p122) target = $region24
      $region23: #{tpu_custom_call.1} parent=5 // pred_region
        %s126 = ssub.s32 %s13, 1
        %s127 = sand.u32 %s40, 1
        %s128 = scalar_lea.sflag [#allocation4], %s127
        %s129 = sand.u32 %s40, 1
        %s130 = smul.addr %s129, 8
        %s131 = scalar_lea.vmem [#allocation3], %s130
        // Predicated region
        $region25: #{tpu_custom_call.1} parent=23 // pred_check
          %p132 = pneg %p53
        $region26: #{tpu_custom_call.1} parent=23 // pred_check_branch
          %134 = sbr.rel (%p132) target = $region28
        $region27: #{tpu_custom_call.1} parent=23 // pred_region
          %136 = dma.done %s128, 128
        $region28: #{tpu_custom_call.1} parent=23 // pred_fallthru
          _
        %s137 = sand.u32 %s40, 1
        %s138 = scalar_lea.sflag [#allocation4], %s137
        %s139 = sand.u32 %s40, 1
        %s140 = smul.addr %s139, 8
        %s141 = scalar_lea.vmem [#allocation3], %s140
        %p142 = pneg %p53
        %p143 = pneg %p50
        %p144 = pneg %p79
        %p145 = pneg %p76
        %s146 = sand.u32 %s66, 1
        %s147 = scalar_lea.sflag [#allocation5], %s146
        %s148 = sand.u32 %s66, 1
        %s149 = scalar_lea.vmem [#allocation6], %s148
        %s150 = smul.u32 2, %s23
        %p151 = scmp.eq.s32.totalorder %s23, 0
        // Predicated region
        $region29: #{tpu_custom_call.1} parent=23 // pred_check
          %p152 = pneg %p151
        $region30: #{tpu_custom_call.1} parent=23 // pred_check_branch
          %154 = sbr.rel (%p152) target = $region32
        $region31: #{tpu_custom_call.1} parent=23 // pred_region
          %v155 = vlaneseq
          %vm156 = vcmp.ge.s32.totalorder %v155, 0
          %vm157 = vcmp.lt.s32.totalorder %v155, 256
          %vm158 = vmand %vm156, %vm157
          %159 = vst.msk [vmem:[#allocation2] sm:$0x3] %vm158, 0.0
        $region32: #{tpu_custom_call.1} parent=23 // pred_fallthru
          _
        %v160 = vld [vmem:[%s131] sm:$0xff]
        %v161 = vsub.f32 1.0, %v160
        %v162 = vmul.f32 %v161, %v161
        %164 = vst [vmem:[#allocation1] ss:$2 sm:$0xff] %v162
        %v165 = vld.sshfl [vmem:[#allocation1] sm:$0xff pattern:$0x75316420]
        %v166 = vld.sshfl [vmem:[#allocation1 + $0x8] sm:$0xff pattern:$0x75316420]
        %vm169 = vcmask 1043456
        %v170 = vsel %vm169, %v165, 0.0
        %v171 = vrot.slane %v170, 4
        %v172 = vadd.f32 %v170, %v171
        %v173 = vrot.slane %v172, 2
        %v174 = vadd.f32 %v172, %v173
        %v175 = vrot.slane %v174, 1
        %v176 = vadd.f32 %v174, %v175
        %v177 = vsel %vm169, %v166, 0.0
        %v178 = vrot.slane %v177, 4
        %v179 = vadd.f32 %v177, %v178
        %v180 = vrot.slane %v179, 2
        %v181 = vadd.f32 %v179, %v180
        %v182 = vrot.slane %v181, 1
        %v183 = vadd.f32 %v181, %v182
        %v184 = vrsqrt.pop %v176
        %v185 = vmul.f32 %v184, %v176
        %v186 = vmul.f32 %v185, %v184
        %v187 = vmul.f32 0.5, %v186
        %v188 = vsub.f32 1.5, %v187
        %v189 = vmul.f32 %v184, %v188
        %v190 = vmul.f32 %v176, %v189
        %vm191 = vcmp.eq.f32.partialorder %v176, inf
        %v192 = vsel %vm191, %v176, %v190
        %vm193 = vcmp.eq.f32.partialorder %v176, 0.0
        %v194 = vand.u32 %v176, 2147483648
        %v195 = vsel %vm193, %v194, %v192
        %v196 = vrsqrt.pop %v183
        %v197 = vmul.f32 %v196, %v183
        %v198 = vmul.f32 %v197, %v196
        %v199 = vmul.f32 0.5, %v198
        %v200 = vsub.f32 1.5, %v199
        %v201 = vmul.f32 %v196, %v200
        %v202 = vmul.f32 %v183, %v201
        %vm203 = vcmp.eq.f32.partialorder %v183, inf
        %v204 = vsel %vm203, %v183, %v202
        %vm205 = vcmp.eq.f32.partialorder %v183, 0.0
        %v206 = vand.u32 %v183, 2147483648
        %v207 = vsel %vm205, %v206, %v204
        %v208 = vld [vmem:[#allocation2] sm:$0x3]
        %v211 = vrot.slane %v207, 7
        %vm212 = vcmask 1040384
        %v213 = vsel %vm212, %v195, %v211
        %v215 = vadd.f32 %v208, %v213
        %v216 = vlaneseq
        %vm217 = vcmp.ge.s32.totalorder %v216, 0
        %vm218 = vcmp.lt.s32.totalorder %v216, 256
        %vm219 = vmand %vm217, %vm218
        %220 = vst.msk [vmem:[#allocation2] sm:$0x3] %vm219, %v215
        // Predicated region
        $region33: #{tpu_custom_call.1} parent=23 // pred_check
          %p221 = pneg %p151
        $region34: #{tpu_custom_call.1} parent=23 // pred_check_branch
          %223 = sbr.rel (%p221) target = $region36
        $region35: #{tpu_custom_call.1} parent=23 // pred_region
          %v224 = vld [vmem:[#allocation2] sm:$0x3]
          %v226 = vperm.slane %v224, 0
          %v227 = vperm.slane %v224, 1
          %v230 = vsel %vm212, %v226, 0.0
          %v231 = vsel %vm212, %v227, 0.0
          %v232 = vadd.f32 %v230, %v231
          %233 = vadd.xlane.f32.xlu0 %v232
          %v234 = vpop.xlane.xlu0 %233
          %v235 = vrot.slane %v234, 4
          %v236 = vadd.f32 %v234, %v235
          %v237 = vrot.slane %v236, 2
          %v238 = vadd.f32 %v236, %v237
          %v239 = vrot.slane %v238, 1
          %v240 = vadd.f32 %v238, %v239
          %s241 = vtos %v240
          %v242 = vstv %s241
          %243 = vst [vmem:[%s149] sm:$0x1] %v242
        $region36: #{tpu_custom_call.1} parent=23 // pred_fallthru
          _
        %s244 = sand.u32 %s66, 1
        %s245 = scalar_lea.sflag [#allocation5], %s244
        %s246 = sand.u32 %s66, 1
        %s247 = scalar_lea.vmem [#allocation6], %s246
        // Predicated region
        $region37: #{tpu_custom_call.1} parent=23 // pred_check
          %p248 = pneg %p76
        $region38: #{tpu_custom_call.1} parent=23 // pred_check_branch
          %250 = sbr.rel (%p248) target = $region40
        $region39: #{tpu_custom_call.1} parent=23 // pred_region
          %252 = vsyncadd %s245, 0
          %s253 = scalar_lea.hbm %s1, %s22
          %s255 = sshll.u32 %s247, 4
          %s256 = int_to_ptr.vmem [resolvable:$true] %s255
          %s257 = sshll.u32 %s253, 4
          %s258 = int_to_ptr.hbm [resolvable:$true] %s257
          %260 = dma.vmem_to_hbm [thread:$0]  %s256, 16, %s258, %s245
        $region40: #{tpu_custom_call.1} parent=23 // pred_fallthru
          _
      $region24: #{tpu_custom_call.1} parent=5 // pred_fallthru
        _
      %p261 = scmp.le.s32.totalorder 2, %s13
      // Predicated region
      $region41: #{tpu_custom_call.1} parent=5 // pred_check
        %p262 = pneg %p261
      $region42: #{tpu_custom_call.1} parent=5 // pred_check_branch
        %264 = sbr.rel (%p262) target = $region44
      $region43: #{tpu_custom_call.1} parent=5 // pred_region
        %s265 = ssub.s32 %s13, 2
        // Predicated region
        $region45: #{tpu_custom_call.1} parent=43 // pred_check
          %p266 = pneg %p82
        $region46: #{tpu_custom_call.1} parent=43 // pred_check_branch
          %268 = sbr.rel (%p266) target = $region48
        $region47: #{tpu_custom_call.1} parent=43 // pred_region
          %s269 = sand.u32 %s67, 1
          %s270 = scalar_lea.sflag [#allocation5], %s269
          %s271 = sand.u32 %s67, 1
          %s272 = scalar_lea.vmem [#allocation6], %s271
          %274 = dma.done %s270, 16
        $region48: #{tpu_custom_call.1} parent=43 // pred_fallthru
          _
      $region44: #{tpu_custom_call.1} parent=5 // pred_fallthru
        _
    $region6: #{tpu_custom_call.1} parent=1 // loop_footer
      %s17 = sadd.s32 1, %s13
    $region7: #{tpu_custom_call.1} parent=1 // loop_footer_branch
      %12 = sbr.rel target = $region3
    $region8: #{tpu_custom_call.1} parent=1 // loop_exit
      _
    %275 = vsyncpa [#allocation4], 1
    %s276 = scalar_lea.sflag [#allocation4], 1
    %277 = vsyncpa %s276, 1
    %278 = vsyncpa [#allocation5], 1
    %s279 = scalar_lea.sflag [#allocation5], 1
    %280 = vsyncpa %s279, 1

</llo_original>
